<compile_context>
chip_gen: v7x
topology: tpu7x:2x2x1
jax: 0.10.0
libtpu: 0.0.40
codegen_flags: <defaults>
</compile_context>

<pallas_src>
import functools

import jax
import jax.numpy as jnp
from jax.experimental import pallas as pl
from jax.experimental.pallas import tpu as pltpu

_MIN_GRID_STEPS = 8   # enough steps for double-buffer overlap + megacore split
_LANES = 128


def _largest_divisor_leq(n, cap):
    cap = max(1, min(n, int(cap)))
    for d in range(cap, 0, -1):
        if n % d == 0:
            return d
    return 1


def _largest_mult8_divisor_leq(n, cap):
    """Largest divisor of n that is a multiple of 8 and <= cap (None if none)."""
    best = None
    d = 8
    cap = min(n, int(cap))
    while d <= cap:
        if n % d == 0:
            best = d
        d += 8
    return best


def _tv_loss_kernel(x_ref, out_ref, acc_ref, carry_ref, *, num_h_tiles):
    t = pl.program_id(1)  # H-tile index ("arbitrary", innermost, serial)

    @pl.when(t == 0)
    def _init():
        acc_ref[0] = jnp.float32(0.0)
        acc_ref[1] = jnp.float32(0.0)

    x = x_ref[...]                # (tile_bc, th, W), native dtype
    th = x.shape[1]

    # TODO(synk): replace the shifted slices with pltpu.roll(x, 1, axis) plus a
    # thin wrap-row/col correction once roll lowering is verified for
    # non-128-multiple W / odd H; the slices force sublane/lane realignment
    # which costs VALU/ld/st slots on v7x (hidden under DMA on v5e/v6e).
    # TODO(synk): for W < 128 on v7x, fold rows so the last dim is lane-dense.
    dh = (x[:, 1:, :] - x[:, :-1, :]).astype(jnp.float32)   # vertical diffs
    dw = (x[:, :, 1:] - x[:, :, :-1]).astype(jnp.float32)   # horizontal diffs
    acc_ref[0] += jnp.sum(dh * dh)
    acc_ref[1] += jnp.sum(dw * dw)

    if num_h_tiles > 1:
        # Seam between this H tile and the previous one (same bc tile):
        # carry_ref holds the previous tile's last row.
        @pl.when(t != 0)
        def _seam():
            seam = (x[:, 0:1, :] - carry_ref[...]).astype(jnp.float32)
            acc_ref[0] += jnp.sum(seam * seam)

        @pl.when(t != num_h_tiles - 1)
        def _save_carry():
            carry_ref[...] = x[:, th - 1:th, :]

    @pl.when(t == num_h_tiles - 1)
    def _finalize():
        # Per-bc-tile partial sums, written as a lane-dense (2, 128) slab
        # (row 0 = h partial, row 1 = w partial, broadcast over lanes).
        # Cross-tile reduction + scaling happen in the wrapper, so the bc-tile
        # axis stays "parallel" (v7x: sharded across both TensorCores).
        row = jax.lax.broadcasted_iota(jnp.int32, (2, _LANES), 0)
        out_ref[0] = jnp.where(row == 0, acc_ref[0], acc_ref[1])


def tv_loss(x, tv_loss_weight=1.0):
    B, C, H, W = x.shape
    assert H >= 2 and W >= 2, "TVLoss needs H >= 2 and W >= 2"
    count_h = C * (H - 1) * W
    count_w = C * H * (W - 1)
    scale = float(tv_loss_weight) * 2.0 / float(B)

    bc = B * C
    x3 = x.reshape(bc, H, W)          # contiguous reshape: metadata only
    itemsize = x3.dtype.itemsize

    # Per-input-block byte budget: keep it small for v7x (64 MiB physical
    # VMEM); raise to 4 MiB on chips with >=96 MiB VMEM (v5e/v6e), where
    # streaming kernels hit ~86% of HBM roofline at that block size.
    try:
        vmem_cap = int(pltpu.get_tpu_info().vmem_capacity_bytes)
    except Exception:
        vmem_cap = 64 * 1024 * 1024
    budget = (4 if vmem_cap >= 96 * 1024 * 1024 else 2) * 1024 * 1024

    plane_bytes = H * W * itemsize
    th = H
    if plane_bytes <= budget:
        tile_bc = _largest_divisor_leq(bc, budget // plane_bytes)
        # Guarantee enough grid steps for pipelining and enough bc tiles for
        # the parallel (megacore) axis; tile_bc always divides bc, so no
        # padding/masking (and no full-tensor jnp.pad HBM copy) is needed.
        if bc // tile_bc < _MIN_GRID_STEPS:
            tile_bc = _largest_divisor_leq(bc, max(1, bc // _MIN_GRID_STEPS))
        if (bc // tile_bc) * (H // th) < _MIN_GRID_STEPS:
            need_h = -(-_MIN_GRID_STEPS // (bc // tile_bc))   # ceil
            cand = _largest_mult8_divisor_leq(H, H // need_h)
            if cand is not None:
                th = cand
    else:
        # Large plane: H-tiling fallback (W stays full; the dh seam is handled
        # via the carry row inside the kernel).
        tile_bc = 1
        cand = _largest_mult8_divisor_leq(H, budget // (W * itemsize))
        if cand is not None:
            th = cand
        # TODO(synk): masked tail handling for H with no multiple-of-8
        # divisor instead of falling back to a full-plane block.

    num_bc_tiles = bc // tile_bc
    num_h_tiles = H // th

    # Explicit VMEM limit sized from the real per-step working set:
    # double-buffered input block + f32 temporaries (dh, dw and squares).
    block_bytes = tile_bc * th * W * itemsize
    block_elems = tile_bc * th * W
    vmem_need = 2 * block_bytes + 4 * block_elems * 4 + (2 << 20)
    vmem_limit = int(min(max(vmem_need, 32 * 1024 * 1024),
                         max(32 * 1024 * 1024, vmem_cap - (8 << 20))))

    kernel = functools.partial(_tv_loss_kernel, num_h_tiles=num_h_tiles)

    partials = pl.pallas_call(
        kernel,
        out_shape=jax.ShapeDtypeStruct((num_bc_tiles, 2, _LANES), jnp.float32),
        grid_spec=pltpu.PrefetchScalarGridSpec(
            num_scalar_prefetch=0,
            grid=(num_bc_tiles, num_h_tiles),
            in_specs=[pl.BlockSpec((tile_bc, th, W), lambda i, t: (i, t, 0))],
            out_specs=pl.BlockSpec((1, 2, _LANES), lambda i, t: (i, 0, 0)),
            scratch_shapes=[
                pltpu.SMEM((2,), jnp.float32),           # h / w partial sums
                pltpu.VMEM((tile_bc, 1, W), x3.dtype),   # carry row for dh seams
            ],
        ),
        compiler_params=pltpu.CompilerParams(
            dimension_semantics=("parallel", "arbitrary"),
            vmem_limit_bytes=vmem_limit,
        ),
    )(x3)

    h_total = jnp.sum(partials[:, 0, 0])
    w_total = jnp.sum(partials[:, 1, 0])
    return jnp.float32(scale) * (h_total / jnp.float32(count_h)
                                 + w_total / jnp.float32(count_w))


def _tv_loss_ref(x, tv_loss_weight=1.0):
    # Pure-JAX reference mirroring the PyTorch TVLoss forward.
    B, C, H, W = x.shape
    count_h = C * (H - 1) * W
    count_w = C * H * (W - 1)
    h_tv = jnp.sum((x[:, :, 1:, :] - x[:, :, :-1, :]) ** 2)
    w_tv = jnp.sum((x[:, :, :, 1:] - x[:, :, :, :-1]) ** 2)
    return tv_loss_weight * 2.0 * (h_tv / count_h + w_tv / count_w) / B


if __name__ == "__main__":
    key = jax.random.PRNGKey(0)
    shapes = [
        (2, 4, 16, 16),   # main shape: 8 parallel bc tiles, single H tile
        (1, 2, 32, 16),   # tiny B*C: exercises the H-tiling + seam-carry path
        (2, 3, 10, 12),   # odd dims: full-H blocks, divisor-only bc tiling
    ]
    for idx, shape in enumerate(shapes):
        k = jax.random.fold_in(key, idx)
        x = jax.random.normal(k, shape, dtype=jnp.float32)
        loss = tv_loss(x, tv_loss_weight=1.0)
        jax.block_until_ready(loss)
        ref = _tv_loss_ref(x, 1.0)
        assert jnp.allclose(loss, ref, rtol=1e-5, atol=1e-6), (shape, loss, ref)
    print("KERNEL_OK")
</pallas_src>

<mosaic_0001>
module attributes {stable_mosaic.version = 11 : i64} {
  func.func @_tv_loss_kernel(%arg0: i32, %arg1: i32, %arg2: memref<1x16x16xf32, #tpu.memory_space<vmem>>, %arg3: memref<1x2x128xf32, #tpu.memory_space<vmem>>, %arg4: memref<2xf32, #tpu.memory_space<smem>>, %arg5: memref<1x1x16xf32, #tpu.memory_space<vmem>>) attributes {dimension_semantics = [#tpu.dimension_semantics<parallel>, #tpu.dimension_semantics<arbitrary>], iteration_bounds = array<i64: 8, 1>, scalar_prefetch = 0 : i64, scratch_operands = 2 : i64, tpu.core_type = #tpu.core_type<tc>, window_params = [{transform_indices = @transform_0, window_bounds = array<i64: 1, 16, 16>}, {transform_indices = @transform_1, window_bounds = array<i64: 1, 2, 128>}]} {
    %c0_i32 = arith.constant 0 : i32
    %0 = arith.cmpi eq, %arg1, %c0_i32 : i32
    %1 = arith.extui %0 : i1 to i32
    %c0_i32_0 = arith.constant 0 : i32
    %2 = arith.cmpi ne, %1, %c0_i32_0 : i32
    scf.if %2 {
      %cst_9 = arith.constant 0.000000e+00 : f32
      %c0_10 = arith.constant 0 : index
      %29 = memref.load %arg4[%c0_10] : memref<2xf32, #tpu.memory_space<smem>>
      memref.store %cst_9, %arg4[%c0_10] : memref<2xf32, #tpu.memory_space<smem>>
      %cst_11 = arith.constant 0.000000e+00 : f32
      %c1_12 = arith.constant 1 : index
      %30 = memref.load %arg4[%c1_12] : memref<2xf32, #tpu.memory_space<smem>>
      memref.store %cst_11, %arg4[%c1_12] : memref<2xf32, #tpu.memory_space<smem>>
    } else {
    }
    %c0 = arith.constant 0 : index
    %c0_1 = arith.constant 0 : index
    %c0_2 = arith.constant 0 : index
    %3 = vector.load %arg2[%c0, %c0_1, %c0_2] : memref<1x16x16xf32, #tpu.memory_space<vmem>>, vector<1x16x16xf32>
    %4 = vector.extract_strided_slice %3 {offsets = [0, 1, 0], sizes = [1, 15, 16], strides = [1, 1, 1]} : vector<1x16x16xf32> to vector<1x15x16xf32>
    %5 = vector.extract_strided_slice %3 {offsets = [0, 0, 0], sizes = [1, 15, 16], strides = [1, 1, 1]} : vector<1x16x16xf32> to vector<1x15x16xf32>
    %6 = arith.subf %4, %5 : vector<1x15x16xf32>
    %7 = vector.extract_strided_slice %3 {offsets = [0, 0, 1], sizes = [1, 16, 15], strides = [1, 1, 1]} : vector<1x16x16xf32> to vector<1x16x15xf32>
    %8 = vector.extract_strided_slice %3 {offsets = [0, 0, 0], sizes = [1, 16, 15], strides = [1, 1, 1]} : vector<1x16x16xf32> to vector<1x16x15xf32>
    %9 = arith.subf %7, %8 : vector<1x16x15xf32>
    %c0_3 = arith.constant 0 : index
    %10 = memref.load %arg4[%c0_3] : memref<2xf32, #tpu.memory_space<smem>>
    %11 = arith.mulf %6, %6 : vector<1x15x16xf32>
    %12 = vector.shape_cast %11 : vector<1x15x16xf32> to vector<1x1x15x16xf32>
    %cst = arith.constant dense<0.000000e+00> : vector<1xf32>
    %13 = vector.multi_reduction <add>, %12, %cst [1, 2, 3] : vector<1x1x15x16xf32> to vector<1xf32>
    %14 = vector.shape_cast %13 : vector<1xf32> to vector<1x1x1x1xf32>
    %15 = vector.extract %14[0, 0, 0, 0] : f32 from vector<1x1x1x1xf32>
    %16 = arith.addf %10, %15 : f32
    %c0_4 = arith.constant 0 : index
    %17 = memref.load %arg4[%c0_4] : memref<2xf32, #tpu.memory_space<smem>>
    memref.store %16, %arg4[%c0_4] : memref<2xf32, #tpu.memory_space<smem>>
    %c1 = arith.constant 1 : index
    %18 = memref.load %arg4[%c1] : memref<2xf32, #tpu.memory_space<smem>>
    %19 = arith.mulf %9, %9 : vector<1x16x15xf32>
    %20 = vector.shape_cast %19 : vector<1x16x15xf32> to vector<1x1x16x15xf32>
    %cst_5 = arith.constant dense<0.000000e+00> : vector<1xf32>
    %21 = vector.multi_reduction <add>, %20, %cst_5 [1, 2, 3] : vector<1x1x16x15xf32> to vector<1xf32>
    %22 = vector.shape_cast %21 : vector<1xf32> to vector<1x1x1x1xf32>
    %23 = vector.extract %22[0, 0, 0, 0] : f32 from vector<1x1x1x1xf32>
    %24 = arith.addf %18, %23 : f32
    %c1_6 = arith.constant 1 : index
    %25 = memref.load %arg4[%c1_6] : memref<2xf32, #tpu.memory_space<smem>>
    memref.store %24, %arg4[%c1_6] : memref<2xf32, #tpu.memory_space<smem>>
    %c0_i32_7 = arith.constant 0 : i32
    %26 = arith.cmpi eq, %arg1, %c0_i32_7 : i32
    %27 = arith.extui %26 : i1 to i32
    %c0_i32_8 = arith.constant 0 : i32
    %28 = arith.cmpi ne, %27, %c0_i32_8 : i32
    scf.if %28 {
      %29 = tpu.iota {dimensions = array<i32: 0>} : vector<2x128xi32>
      %c0_i32_9 = arith.constant 0 : i32
      %30 = vector.broadcast %c0_i32_9 : i32 to vector<2x128xi32>
      %31 = arith.cmpi eq, %29, %30 : vector<2x128xi32>
      %c0_10 = arith.constant 0 : index
      %32 = memref.load %arg4[%c0_10] : memref<2xf32, #tpu.memory_space<smem>>
      %c1_11 = arith.constant 1 : index
      %33 = memref.load %arg4[%c1_11] : memref<2xf32, #tpu.memory_space<smem>>
      %34 = vector.broadcast %32 : f32 to vector<2x128xf32>
      %35 = vector.broadcast %33 : f32 to vector<2x128xf32>
      %36 = arith.select %31, %34, %35 : vector<2x128xi1>, vector<2x128xf32>
      %c0_12 = arith.constant 0 : index
      %c0_13 = arith.constant 0 : index
      %c0_14 = arith.constant 0 : index
      %37 = vector.load %arg3[%c0_12, %c0_13, %c0_14] : memref<1x2x128xf32, #tpu.memory_space<vmem>>, vector<1x2x128xf32>
      %38 = vector.shape_cast %37 : vector<1x2x128xf32> to vector<2x128xf32>
      %39 = vector.shape_cast %36 : vector<2x128xf32> to vector<1x2x128xf32>
      tpu.vector_store %arg3[%c0_12, %c0_13, %c0_14], %39 {strides = array<i32>} : memref<1x2x128xf32, #tpu.memory_space<vmem>>, vector<1x2x128xf32>,
    } else {
    }
    return
  }
  func.func @transform_0(%arg0: i32, %arg1: i32) -> (i32, i32, i32) {
    %c0_i32 = arith.constant 0 : i32
    %c0_i32_0 = arith.constant 0 : i32
    return %arg0, %arg1, %c0_i32 : i32, i32, i32
  }
  func.func @transform_1(%arg0: i32, %arg1: i32) -> (i32, i32, i32) {
    %c0_i32 = arith.constant 0 : i32
    %c0_i32_0 = arith.constant 0 : i32
    %c0_i32_1 = arith.constant 0 : i32
    return %arg0, %c0_i32, %c0_i32_0 : i32, i32, i32
  }
}

</mosaic_0001>

<llo_original>
// kernel: tpu_custom_call.1
$region0: #{tpu_custom_call.1}
  #allocation0 [shape = 'u32[]', space=smem, size = 0x4, offset = 0x4, fixed_abs, tag = 'smem constant byte address 0x4 - core index']
  #allocation1 [shape = 'u32[144,128]{1,0:T(1,128)}', space=vmem, size = 0x12000, scoped, tag = 'internal scratch']
  #allocation2 [shape = 'f32[2]{0:T(128)}', space=smem, size = 0x200, scoped, tag = 'scratch operand']
  #allocation3 [shape = 'f32[1,1,16]{2,1,0:T(1,128)}', space=vmem, size = 0x200, scoped, tag = 'scratch operand']
  %s0 = inlined_call_operand.hbm [shape: f32[8,16,16], index: 0, kind: input, shape index: {}]
  %s1 = inlined_call_operand.hbm [shape: f32[8,2,128], index: 1, kind: output, shape index: {}]
  %s2 = sld [smem:[#allocation0]]
  $region49: #{tpu_custom_call.1} parent=0
    _
  %s4 = ssub.s32 1, %s2
  %s5 = scalar_select 0, %s4, %s2
  $region1: #{tpu_custom_call.1} parent=0
    #allocation4 [shape = 'u8[16384]{0}', space=vmem, size = 0x4000, scoped, tag = 'input window, operand 0']
    #allocation5 [shape = 's32[2]{0}', space=sflag, size = 0x8, scoped, tag = 'scoped memory for tpu_custom_call.1']
    #allocation6 [shape = 's32[2]{0}', space=sflag, size = 0x8, scoped, tag = 'scoped memory for tpu_custom_call.1']
    #allocation7 [shape = 'u8[2048]{0}', space=vmem, size = 0x800, scoped, tag = 'output window, operand 0']
    %6 = vsyncpa [#allocation5], 0
    %s7 = scalar_lea.sflag [#allocation5], 1
    %8 = vsyncpa %s7, 0
    %9 = vsyncpa [#allocation6], 0
    %s10 = scalar_lea.sflag [#allocation6], 1
    %11 = vsyncpa %s10, 0
    loop: start=0, step=1, limit=10
    $region2: #{tpu_custom_call.1} parent=1 // loop_pre_header
      _
    $region3: #{tpu_custom_call.1} parent=1 // loop_header
      %s13 = sphi 0, %s17
      %p14 = scmp.ge.s32.totalorder %s13, 10
      %s20 = sphi 0, %s32
      %s21 = sphi 0, %s28
      %s22 = sphi 0, %s20
      %s23 = sphi 0, %s21
      %s24 = sphi 0, %s22
      %s25 = sphi 0, %s23
      %s37 = sphi 0, %s39
      %s40 = sphi 0, %s37
      %s41 = sphi 0, %s40
      %s57 = sphi 0, %s41
      %s63 = sphi 0, %s65
      %s66 = sphi 0, %s63
      %s67 = sphi 0, %s66
      %s83 = sphi 0, %s67
    $region4: #{tpu_custom_call.1} parent=1 // loop_header_branch
      %16 = sbr.rel (%p14) target = $region8
    $region5: #{tpu_custom_call.1} parent=1 // loop_body
      %s18 = ssub.s32 %s13, 1
      %s19 = ssub.s32 %s13, 2
      %s26 = sadd.s32 1, %s21
      %p27 = scmp.ge.s32.totalorder %s26, 1
      %s28 = scalar_select %p27, 0, %s26
      %s29 = sadd.s32 1, %s20
      %s30 = scalar_select %p27, %s29, %s20
      %p31 = scmp.ge.s32.totalorder %s30, 8
      %s32 = scalar_select %p31, 0, %s30
      %s33 = ssub.s32 %s20, %s32
      %s34 = ssub.s32 %s21, %s28
      %s35 = sor.u32 %s33, %s34
      %p36 = scmp.eq.s32.totalorder %s35, 0
      %s38 = sadd.s32 %s37, 1
      %s39 = scalar_select %p36, %s37, %s38
      %p42 = pneg %p36
      %p43 = scmp.eq.s32.totalorder %s13, 7
      %p44 = por %p42, %p43
      %p45 = scmp.ne.s32.totalorder %s37, %s40
      %p46 = scmp.eq.s32.totalorder %s13, 0
      %p47 = por %p45, %p46
      %p48 = scmp.ne.s32.totalorder %s37, %s40
      %p49 = scmp.eq.s32.totalorder %s18, 7
      %p50 = por %p48, %p49
      %p51 = scmp.ne.s32.totalorder %s40, %s41
      %p52 = scmp.eq.s32.totalorder %s18, 0
      %p53 = por %p51, %p52
      %p54 = scmp.ne.s32.totalorder %s40, %s41
      %p55 = scmp.eq.s32.totalorder %s19, 7
      %p56 = por %p54, %p55
      %p58 = scmp.ne.s32.totalorder %s41, %s57
      %p59 = scmp.eq.s32.totalorder %s19, 0
      %p60 = por %p58, %p59
      %s61 = ssub.s32 %s20, %s32
      %p62 = scmp.eq.s32.totalorder %s61, 0
      %s64 = sadd.s32 %s63, 1
      %s65 = scalar_select %p62, %s63, %s64
      %p68 = pneg %p62
      %p69 = scmp.eq.s32.totalorder %s13, 7
      %p70 = por %p68, %p69
      %p71 = scmp.ne.s32.totalorder %s63, %s66
      %p72 = scmp.eq.s32.totalorder %s13, 0
      %p73 = por %p71, %p72
      %p74 = scmp.ne.s32.totalorder %s63, %s66
      %p75 = scmp.eq.s32.totalorder %s18, 7
      %p76 = por %p74, %p75
      %p77 = scmp.ne.s32.totalorder %s66, %s67
      %p78 = scmp.eq.s32.totalorder %s18, 0
      %p79 = por %p77, %p78
      %p80 = scmp.ne.s32.totalorder %s66, %s67
      %p81 = scmp.eq.s32.totalorder %s19, 7
      %p82 = por %p80, %p81
      %p84 = scmp.ne.s32.totalorder %s67, %s83
      %p85 = scmp.eq.s32.totalorder %s19, 0
      %p86 = por %p84, %p85
      %p87 = scmp.le.s32.totalorder 1, %s13
      %p88 = scmp.lt.s32.totalorder %s13, 9
      %p89 = pnand %p87, %p88
      %p90 = pneg %p89
      // Predicated region
      $region9: #{tpu_custom_call.1} parent=5 // pred_check
        _
      $region10: #{tpu_custom_call.1} parent=5 // pred_check_branch
        %92 = sbr.rel (%p89) target = $region12
      $region11: #{tpu_custom_call.1} parent=5 // pred_region
        %s93 = ssub.s32 %s13, 1
      $region12: #{tpu_custom_call.1} parent=5 // pred_fallthru
        _
      %p94 = scmp.lt.s32.totalorder %s13, 8
      // Predicated region
      $region13: #{tpu_custom_call.1} parent=5 // pred_check
        %p95 = pneg %p94
      $region14: #{tpu_custom_call.1} parent=5 // pred_check_branch
        %97 = sbr.rel (%p95) target = $region16
      $region15: #{tpu_custom_call.1} parent=5 // pred_region
        // Predicated region
        $region17: #{tpu_custom_call.1} parent=15 // pred_check
          %p98 = pneg %p47
        $region18: #{tpu_custom_call.1} parent=15 // pred_check_branch
          %100 = sbr.rel (%p98) target = $region20
        $region19: #{tpu_custom_call.1} parent=15 // pred_region
          %s101 = sand.u32 %s37, 1
          %s102 = scalar_lea.sflag [#allocation5], %s101
          %s103 = sand.u32 %s37, 1
          %s104 = smul.addr %s103, 16
          %s105 = scalar_lea.vmem [#allocation4], %s104
          %s106 = smul.u32 2, %s21
          %s108 = ssub.s32 256, 256
          %109 = vsyncadd %s102, %s108
          %s110 = smul.addr %s20, 2
          %s111 = sadd.s32 %s106, %s110
          %s112 = smul.addr %s111, 128
          %s113 = scalar_lea.hbm %s0, %s112
          %s114 = sshll.u32 %s105, 4
          %s115 = int_to_ptr.vmem [resolvable:$true] %s114
          %120 = dma.hbm_to_vmem [thread:$0]  %s113, 256, %s115, %s102, 128, 128, 8
        $region20: #{tpu_custom_call.1} parent=15 // pred_fallthru
          _
      $region16: #{tpu_custom_call.1} parent=5 // pred_fallthru
        _
      %p121 = scmp.le.s32.totalorder 1, %s13
      %p122 = scmp.lt.s32.totalorder %s13, 9
      %p123 = pnand %p121, %p122
      %p124 = pneg %p123
      // Predicated region
      $region21: #{tpu_custom_call.1} parent=5 // pred_check
        _
      $region22: #{tpu_custom_call.1} parent=5 // pred_check_branch
        %126 = sbr.rel (%p123) target = $region24
      $region23: #{tpu_custom_call.1} parent=5 // pred_region
        %s127 = ssub.s32 %s13, 1
        %s128 = sand.u32 %s40, 1
        %s129 = scalar_lea.sflag [#allocation5], %s128
        %s130 = sand.u32 %s40, 1
        %s131 = smul.addr %s130, 16
        %s132 = scalar_lea.vmem [#allocation4], %s131
        // Predicated region
        $region25: #{tpu_custom_call.1} parent=23 // pred_check
          %p133 = pneg %p53
        $region26: #{tpu_custom_call.1} parent=23 // pred_check_branch
          %135 = sbr.rel (%p133) target = $region28
        $region27: #{tpu_custom_call.1} parent=23 // pred_region
          %136 = dma.done %s129, 256
        $region28: #{tpu_custom_call.1} parent=23 // pred_fallthru
          _
        %s137 = sand.u32 %s40, 1
        %s138 = scalar_lea.sflag [#allocation5], %s137
        %s139 = sand.u32 %s40, 1
        %s140 = smul.addr %s139, 16
        %s141 = scalar_lea.vmem [#allocation4], %s140
        %p142 = pneg %p53
        %p143 = pneg %p50
        %p144 = pneg %p79
        %p145 = pneg %p76
        %s146 = sand.u32 %s66, 1
        %s147 = scalar_lea.sflag [#allocation6], %s146
        %s148 = sand.u32 %s66, 1
        %s149 = smul.addr %s148, 2
        %s150 = scalar_lea.vmem [#allocation7], %s149
        %s151 = smul.u32 2, %s23
        %p152 = scmp.eq.s32.totalorder %s23, 0
        // Predicated region
        $region29: #{tpu_custom_call.1} parent=23 // pred_check
          %p153 = pneg %p152
        $region30: #{tpu_custom_call.1} parent=23 // pred_check_branch
          %155 = sbr.rel (%p153) target = $region32
        $region31: #{tpu_custom_call.1} parent=23 // pred_region
          %s156 = scalar_lea.smem [#allocation2], 0
          %157 = sst [smem:[%s156]] 0.0
          %s158 = scalar_lea.smem [#allocation2], 1
          %159 = sst [smem:[%s158]] 0.0
        $region32: #{tpu_custom_call.1} parent=23 // pred_fallthru
          _
        %v160 = vld [vmem:[%s132] sm:$0xff]
        %v161 = vld [vmem:[%s132 + $0x8] sm:$0xff]
        %vm164 = vcmask 1040384
        %v165 = vrot.slane %v160, 7
        %v166 = vrot.slane %v161, 7
        %v167 = vsel %vm164, %v165, %v166
        %v170 = vsub.f32 %v160, %v165
        %v171 = vsub.f32 %v161, %v167
        %172 = vrot.lane.b32.xlu0 %v160, 1
        %v173 = vpop.permute.xlu0 %172
        %174 = vrot.lane.b32.xlu0 %v161, 1
        %v175 = vpop.permute.xlu0 %174
        %v178 = vsub.f32 %v160, %v173
        %v179 = vsub.f32 %v161, %v175
        %s180 = sld [smem:[#allocation2]]
        %v181 = vmul.f32 %v170, %v170
        %v182 = vmul.f32 %v171, %v171
        %vm185 = vcmask 1046528
        %v186 = vrot.slane %v181, 1
        %v187 = vrot.slane %v182, 1
        %v188 = vsel %vm185, %v186, %v187
        %vm191 = vcmask 130048
        %v192 = vsel %vm191, %v188, 0.0
        %vm193 = vcmask 129024
        %v194 = vsel %vm193, %v187, 0.0
        %v195 = vadd.f32 %v192, %v194
        %196 = vadd.xlane.f32.xlu0 %v195
        %v197 = vpop.xlane.xlu0 %196
        %v198 = vrot.slane %v197, 4
        %v199 = vadd.f32 %v197, %v198
        %v200 = vrot.slane %v199, 2
        %v201 = vadd.f32 %v199, %v200
        %v202 = vrot.slane %v201, 1
        %v203 = vadd.f32 %v201, %v202
        %s204 = vtos %v203
        %s205 = sadd.f32 %s180, %s204
        %s206 = scalar_lea.smem [#allocation2], 0
        %207 = sst [smem:[%s206]] %s205
        %s208 = sld [smem:[#allocation2 + $0x1]]
        %v209 = vmul.f32 %v178, %v178
        %v210 = vmul.f32 %v179, %v179
        %213 = vrot.lane.b32.xlu0 %v209, 127
        %v214 = vpop.permute.xlu0 %213
        %215 = vrot.lane.b32.xlu0 %v210, 127
        %v216 = vpop.permute.xlu0 %215
        %vm219 = vcmask 121856
        %v220 = vsel %vm219, %v214, 0.0
        %v221 = vsel %vm219, %v216, 0.0
        %v222 = vadd.f32 %v220, %v221
        %223 = vadd.xlane.f32.xlu0 %v222
        %v224 = vpop.xlane.xlu0 %223
        %v225 = vrot.slane %v224, 4
        %v226 = vadd.f32 %v224, %v225
        %v227 = vrot.slane %v226, 2
        %v228 = vadd.f32 %v226, %v227
        %v229 = vrot.slane %v228, 1
        %v230 = vadd.f32 %v228, %v229
        %s231 = vtos %v230
        %s232 = sadd.f32 %s208, %s231
        %s233 = scalar_lea.smem [#allocation2], 1
        %234 = sst [smem:[%s233]] %s232
        // Predicated region
        $region33: #{tpu_custom_call.1} parent=23 // pred_check
          %p235 = pneg %p152
        $region34: #{tpu_custom_call.1} parent=23 // pred_check_branch
          %237 = sbr.rel (%p235) target = $region36
        $region35: #{tpu_custom_call.1} parent=23 // pred_region
          %v238 = vlaneseq
          %v239 = vshrl.u32 %v238, 7
          %vm240 = vcmp.eq.s32.totalorder %v239, 0
          %s241 = sld [smem:[#allocation2]]
          %s242 = sld [smem:[#allocation2 + $0x1]]
          %v243 = vstv %s241
          %v244 = vstv %s242
          %v245 = vsel %vm240, %v243, %v244
          %246 = vst [vmem:[%s150] sm:$0x3] %v245
        $region36: #{tpu_custom_call.1} parent=23 // pred_fallthru
          _
        %s247 = sand.u32 %s66, 1
        %s248 = scalar_lea.sflag [#allocation6], %s247
        %s249 = sand.u32 %s66, 1
        %s250 = smul.addr %s249, 2
        %s251 = scalar_lea.vmem [#allocation7], %s250
        // Predicated region
        $region37: #{tpu_custom_call.1} parent=23 // pred_check
          %p252 = pneg %p76
        $region38: #{tpu_custom_call.1} parent=23 // pred_check_branch
          %254 = sbr.rel (%p252) target = $region40
        $region39: #{tpu_custom_call.1} parent=23 // pred_region
          %s256 = ssub.s32 32, 32
          %257 = vsyncadd %s248, %s256
          %s258 = smul.addr %s22, 32
          %s259 = scalar_lea.hbm %s1, %s258
          %s261 = sshll.u32 %s251, 4
          %s262 = int_to_ptr.vmem [resolvable:$true] %s261
          %264 = dma.vmem_to_hbm [thread:$0]  %s262, 32, %s259, %s248
        $region40: #{tpu_custom_call.1} parent=23 // pred_fallthru
          _
      $region24: #{tpu_custom_call.1} parent=5 // pred_fallthru
        _
      %p265 = scmp.le.s32.totalorder 2, %s13
      // Predicated region
      $region41: #{tpu_custom_call.1} parent=5 // pred_check
        %p266 = pneg %p265
      $region42: #{tpu_custom_call.1} parent=5 // pred_check_branch
        %268 = sbr.rel (%p266) target = $region44
      $region43: #{tpu_custom_call.1} parent=5 // pred_region
        %s269 = ssub.s32 %s13, 2
        // Predicated region
        $region45: #{tpu_custom_call.1} parent=43 // pred_check
          %p270 = pneg %p82
        $region46: #{tpu_custom_call.1} parent=43 // pred_check_branch
          %272 = sbr.rel (%p270) target = $region48
        $region47: #{tpu_custom_call.1} parent=43 // pred_region
          %s273 = sand.u32 %s67, 1
          %s274 = scalar_lea.sflag [#allocation6], %s273
          %s275 = sand.u32 %s67, 1
          %s276 = smul.addr %s275, 2
          %s277 = scalar_lea.vmem [#allocation7], %s276
          %278 = dma.done %s274, 32
        $region48: #{tpu_custom_call.1} parent=43 // pred_fallthru
          _
      $region44: #{tpu_custom_call.1} parent=5 // pred_fallthru
        _
    $region6: #{tpu_custom_call.1} parent=1 // loop_footer
      %s17 = sadd.s32 1, %s13
    $region7: #{tpu_custom_call.1} parent=1 // loop_footer_branch
      %12 = sbr.rel target = $region3
    $region8: #{tpu_custom_call.1} parent=1 // loop_exit
      _
    %279 = vsyncpa [#allocation5], 1
    %s280 = scalar_lea.sflag [#allocation5], 1
    %281 = vsyncpa %s280, 1
    %282 = vsyncpa [#allocation6], 1
    %s283 = scalar_lea.sflag [#allocation6], 1
    %284 = vsyncpa %s283, 1

</llo_original>
